<compile_context>
chip_gen: v7x
topology: tpu7x:2x2x1
jax: 0.10.0
libtpu: 0.0.40
codegen_flags: <defaults>
</compile_context>

<pallas_src>
import functools
import math

import jax
import jax.numpy as jnp
from jax import lax
from jax.experimental import pallas as pl
from jax.experimental.pallas import tpu as pltpu


_MASK_VALUE = -1e30                 # large finite negative (avoids -inf/NaN corner)


def _default_vmem_limit():
    try:
        info = pltpu.get_tpu_info()
        cap = int(getattr(info, "vmem_capacity_bytes", 128 * 1024 * 1024))
    except Exception:
        cap = 128 * 1024 * 1024
    # 96 MiB on 128 MiB parts (v5e/v6e), 48 MiB on v7x's 64 MiB per-TC VMEM.
    return int(min(96 * 1024 * 1024, (cap * 3) // 4))


_VMEM_LIMIT = _default_vmem_limit()


# ----------------------------------------------------------------------------
# Tiling helpers
# ----------------------------------------------------------------------------
def _tile(dim, target, quantum):
    """Largest tile <= target that divides `dim`, preferring `quantum` multiples
    (TPU (8,128) block constraint). Falls back to the full dim if needed."""
    if dim <= target:
        return dim
    t = (target // quantum) * quantum
    while t >= quantum:
        if dim % t == 0:
            return t
        t -= quantum
    return dim


def _pick_head_group(n_head, head_dim):
    """Smallest head group hg | n_head with hg*head_dim a multiple of 128
    (lane-dense output block); fall back to all heads (hg*E == D, full dim)."""
    for hg in range(1, n_head + 1):
        if n_head % hg == 0 and (hg * head_dim) % 128 == 0:
            return hg
    return n_head


def _pick_row_tile(n_rows, s, target):
    """Row tile for the (B*S, ...) projection: divides n_rows and is either a
    divisor of S or a multiple of S (so rotary tables tile cleanly)."""
    if s >= target:
        return _tile(s, target, 8)
    b = n_rows // s
    c = 1
    for cand in range(1, b + 1):
        if b % cand == 0 and cand * s <= target:
            c = cand
    return c * s


# ----------------------------------------------------------------------------
# Fused QKV projection kernel:
#   y = x @ W_qkv + b_qkv            (LoRA merged into W_qkv in the wrapper)
#   optionally followed, in the final-k epilogue, by fused RoPE + 1/sqrt(E):
#   y = y * cos3 + rot_half_per_head(y) * sin3
# where cos3/sin3 encode (q: rope*scale, k: rope, v: identity) per column.
# ----------------------------------------------------------------------------
def _qkv_proj_kernel(*refs, head_dim, fuse_rope):
    if fuse_rope:
        x_ref, w_ref, b_ref, cos_ref, sin_ref, o_ref, acc_ref = refs
    else:
        x_ref, w_ref, b_ref, o_ref, acc_ref = refs
        cos_ref = sin_ref = None

    @pl.when(pl.program_id(2) == 0)
    def _init():
        acc_ref[...] = jnp.zeros_like(acc_ref)

    # Operands stay in their native dtype; accumulate in f32 on the MXU.
    acc_ref[...] += jnp.dot(x_ref[...], w_ref[...],
                            preferred_element_type=jnp.float32)

    @pl.when(pl.program_id(2) == pl.num_programs(2) - 1)
    def _store():
        y = acc_ref[...] + b_ref[...]                       # (tm, tn) f32
        if fuse_rope:
            half = head_dim // 2
            # Per-head swap of the two halves (sign is folded into sin3):
            # rot[:, h*E + e] = y[:, h*E + (e+half) % E]
            parts = []
            for c0 in range(0, y.shape[-1], head_dim):
                parts.append(y[:, c0 + half: c0 + head_dim])
                parts.append(y[:, c0: c0 + half])
            rot = jnp.concatenate(parts, axis=-1)
            y = y * cos_ref[...] + rot * sin_ref[...]
        o_ref[...] = y.astype(o_ref.dtype)


def _qkv_projection(x2d, w_qkv, b_qkv, cos3, sin3, *, tm, tn, tk, nrb,
                    head_dim, fuse_rope):
    n, din = x2d.shape
    dout = w_qkv.shape[1]
    grid = (n // tm, dout // tn, din // tk)

    in_specs = [
        pl.BlockSpec((tm, tk), lambda i, j, k: (i, k)),
        pl.BlockSpec((tk, tn), lambda i, j, k: (k, j)),
        pl.BlockSpec((1, tn), lambda i, j, k: (0, j)),
    ]
    args = [x2d, w_qkv, b_qkv]
    if fuse_rope:
        if nrb > 1:
            rope_map = lambda i, j, k: (i % nrb, j)
        else:
            rope_map = lambda i, j, k: (0, j)
        in_specs += [pl.BlockSpec((tm, tn), rope_map),
                     pl.BlockSpec((tm, tn), rope_map)]
        args += [cos3, sin3]

    kernel = functools.partial(_qkv_proj_kernel, head_dim=head_dim,
                               fuse_rope=fuse_rope)
    return pl.pallas_call(
        kernel,
        out_shape=jax.ShapeDtypeStruct((n, dout), x2d.dtype),
        grid=grid,
        in_specs=in_specs,
        out_specs=pl.BlockSpec((tm, tn), lambda i, j, k: (i, j)),
        scratch_shapes=[pltpu.VMEM((tm, tn), jnp.float32)],
        compiler_params=pltpu.CompilerParams(
            dimension_semantics=("parallel", "parallel", "arbitrary"),
            vmem_limit_bytes=_VMEM_LIMIT),
    )(*args)


# ----------------------------------------------------------------------------
# Flash-style attention kernel (online softmax, causal + additive key mask)
# grid = (batch, head_group, q_tile, kv_tile); kv_tile is the reduction axis.
# q already contains the 1/sqrt(E) scale; q/k are already rotary-embedded.
# Output is written lane-dense directly into (B, S, D).
# ----------------------------------------------------------------------------
def _flash_attn_kernel(q_ref, k_ref, v_ref, mask_ref, o_ref,
                       m_sc, l_sc, acc_sc, *, tq, tk, hg, head_dim):
    qi = pl.program_id(2)
    ki = pl.program_id(3)

    @pl.when(ki == 0)
    def _init():
        m_sc[...] = jnp.full_like(m_sc, -jnp.inf)
        l_sc[...] = jnp.zeros_like(l_sc)
        acc_sc[...] = jnp.zeros_like(acc_sc)

    q_start = qi * tq
    k_start = ki * tk
    in_range = k_start <= q_start + tq - 1          # block not fully above diag
    straddles = k_start + tk - 1 > q_start          # block needs causal masking

    def update(apply_causal):
        q = q_ref[0]                                # (hg, tq, E)
        k = k_ref[0]                                # (hg, tk, E)
        v = v_ref[0]                                # (hg, tk, E)

        s = jnp.einsum('hqe,hke->hqk', q, k,
                       preferred_element_type=jnp.float32)   # (hg, tq, tk)
        s = s + mask_ref[0]                         # (1, tk) additive key mask
        if apply_causal:
            row = q_start + lax.broadcasted_iota(jnp.int32, (tq, tk), 0)
            col = k_start + lax.broadcasted_iota(jnp.int32, (tq, tk), 1)
            s = jnp.where(col <= row, s, _MASK_VALUE)

        m_prev = m_sc[...]
        m_new = jnp.maximum(m_prev, s.max(axis=-1, keepdims=True))
        alpha = jnp.exp(m_prev - m_new)
        p = jnp.exp(s - m_new)
        l_sc[...] = alpha * l_sc[...] + p.sum(axis=-1, keepdims=True)
        acc_sc[...] = alpha * acc_sc[...] + jnp.einsum(
            'hqk,hke->hqe', p.astype(v.dtype), v,
            preferred_element_type=jnp.float32)
        m_sc[...] = m_new

    @pl.when(in_range & straddles)
    def _masked_update():
        update(True)

    @pl.when(in_range & jnp.logical_not(straddles))
    def _unmasked_update():
        update(False)

    @pl.when(ki == pl.num_programs(3) - 1)
    def _finalize():
        inv_l = pl.reciprocal(l_sc[...], approx=True)            # (hg, tq, 1)
        out = (acc_sc[...] * inv_l).astype(o_ref.dtype)          # (hg, tq, E)
        # scatter head-group results into the lane-dense (tq, hg*E) output block
        for g in range(hg):
            o_ref[0, :, g * head_dim:(g + 1) * head_dim] = out[g]


def flash_attention(q, k, v, mask3):
    """q,k,v: (B, H, S, E) (q pre-scaled, q/k pre-roped); mask3: (B, 1, S).
    Returns (B, S, H*E) directly (no head-major output transpose needed)."""
    B, H, S, E = q.shape
    hg = _pick_head_group(H, E)
    tq = _tile(S, 256, 8)
    tk = _tile(S, 512, 128)
    grid = (B, H // hg, S // tq, S // tk)

    def q_map(b, h, i, j):
        return (b, h, i, 0)

    def kv_map(b, h, i, j):
        # Clamp past-diagonal kv blocks so Pallas skips their DMA entirely.
        return (b, h, jnp.minimum(j, (i * tq + tq - 1) // tk), 0)

    def mask_map(b, h, i, j):
        return (b, 0, jnp.minimum(j, (i * tq + tq - 1) // tk))

    def o_map(b, h, i, j):
        return (b, i, h)

    kernel = functools.partial(_flash_attn_kernel, tq=tq, tk=tk, hg=hg,
                               head_dim=E)
    return pl.pallas_call(
        kernel,
        out_shape=jax.ShapeDtypeStruct((B, S, H * E), q.dtype),
        grid=grid,
        in_specs=[
            pl.BlockSpec((1, hg, tq, E), q_map),
            pl.BlockSpec((1, hg, tk, E), kv_map),
            pl.BlockSpec((1, hg, tk, E), kv_map),
            pl.BlockSpec((1, 1, tk), mask_map),
        ],
        out_specs=pl.BlockSpec((1, tq, hg * E), o_map),
        scratch_shapes=[
            pltpu.VMEM((hg, tq, 1), jnp.float32),   # running max m
            pltpu.VMEM((hg, tq, 1), jnp.float32),   # running denom l
            pltpu.VMEM((hg, tq, E), jnp.float32),   # output accumulator
        ],
        compiler_params=pltpu.CompilerParams(
            dimension_semantics=("parallel", "parallel", "parallel", "arbitrary"),
            vmem_limit_bytes=_VMEM_LIMIT),
    )(q, k, v, mask3)


# ----------------------------------------------------------------------------
# Full forward (glue in plain JAX, hot paths in the kernels above)
# ----------------------------------------------------------------------------
def esm_self_attn_pallas(x, attention_mask, params, n_head):
    B, S, D = x.shape
    assert D % n_head == 0
    H = n_head
    E = D // H
    half = E // 2

    # --- pad S so tiles never fall back to unbounded full-S blocks ---------
    if S > 128:
        S_pad = ((S + 127) // 128) * 128
    else:
        S_pad = ((S + 7) // 8) * 8
    if S_pad != S:
        x = jnp.pad(x, ((0, 0), (0, S_pad - S), (0, 0)))
        attention_mask = jnp.pad(attention_mask, ((0, 0), (0, S_pad - S)),
                                 constant_values=_MASK_VALUE)

    # --- merge LoRA into the weights (W' = W + A @ (alpha*B)) --------------
    def eff_w(p):
        w = p["w"]
        if p["use_lora"]:
            w = w + p["lora_a"] @ p["lora_b_scaled"]
        return w

    w_qkv = jnp.concatenate(
        [eff_w(params[n]) for n in ("query", "key", "value")], axis=1
    ).astype(x.dtype)
    b_qkv = jnp.concatenate(
        [params[n]["b"] for n in ("query", "key", "value")], axis=1
    ).astype(jnp.float32)

    # --- projection tiling + decide whether RoPE can be fused in-kernel ----
    N = B * S_pad
    dout = 3 * D
    tm = _pick_row_tile(N, S_pad, 512)
    tn = _tile(dout, 256, 128)
    tkk = _tile(D, 512, 128)
    fuse_rope = (E % 2 == 0) and (tn % E == 0) and (tn % 128 == 0)

    # --- ESM rotary tables --------------------------------------------------
    inv_freq = 1.0 / (10000.0 ** (jnp.arange(0, E, 2, dtype=jnp.float32) / E))
    t = jnp.arange(S_pad, dtype=jnp.float32)
    freqs = jnp.outer(t, inv_freq)
    emb = jnp.concatenate([freqs, freqs], axis=-1)                  # (S_pad, E)
    cos, sin = jnp.cos(emb), jnp.sin(emb)
    scale = 1.0 / math.sqrt(E)

    x2d = x.reshape(N, D)

    if fuse_rope:
        # sign of rotate_half folded into sin; q columns carry the 1/sqrt(E)
        # scale; v columns are identity (cos=1, sin=0).
        sign = jnp.concatenate([-jnp.ones((half,), jnp.float32),
                                jnp.ones((half,), jnp.float32)])
        sin_s = sin * sign
        cos3 = jnp.concatenate([jnp.tile(cos * scale, (1, H)),
                                jnp.tile(cos, (1, H)),
                                jnp.ones((S_pad, D), jnp.float32)], axis=1)
        sin3 = jnp.concatenate([jnp.tile(sin_s * scale, (1, H)),
                                jnp.tile(sin_s, (1, H)),
                                jnp.zeros((S_pad, D), jnp.float32)], axis=1)
        if tm % S_pad == 0:
            reps = tm // S_pad
            cos3 = jnp.tile(cos3, (reps, 1))
            sin3 = jnp.tile(sin3, (reps, 1))
            nrb = 1
        else:
            nrb = S_pad // tm
        qkv = _qkv_projection(x2d, w_qkv, b_qkv, cos3, sin3,
                              tm=tm, tn=tn, tk=tkk, nrb=nrb,
                              head_dim=E, fuse_rope=True)
    else:
        qkv = _qkv_projection(x2d, w_qkv, b_qkv, None, None,
                              tm=tm, tn=tn, tk=tkk, nrb=1,
                              head_dim=E, fuse_rope=False)

    qkv = qkv.reshape(B, S_pad, 3, H, E)
    q = qkv[:, :, 0].transpose(0, 2, 1, 3)                          # (B, H, S, E)
    k = qkv[:, :, 1].transpose(0, 2, 1, 3)
    v = qkv[:, :, 2].transpose(0, 2, 1, 3)
    # TODO(synk): the three head-major transposes above are still separate XLA
    # copies; they could be removed by storing q/k/v in a (B, H//hg, S, hg*E)
    # layout from the projection kernel and consuming it directly in attention.

    if not fuse_rope:
        # fallback RoPE in the wrapper (tiny / unaligned shapes)
        def rotate_half(u):
            u1, u2 = u[..., :half], u[..., half:]
            return jnp.concatenate([-u2, u1], axis=-1)

        def rope(u):
            return u * cos + rotate_half(u) * sin

        q = (rope(q) * scale).astype(x.dtype)
        k = rope(k).astype(x.dtype)

    # finite additive key mask (clamp -inf so fully-masked rows stay NaN-free)
    mask3 = jnp.maximum(attention_mask.astype(jnp.float32),
                        _MASK_VALUE).reshape(B, 1, S_pad)

    y = flash_attention(q, k, v, mask3)                             # (B, S_pad, D)
    return y[:, :S, :]


# ----------------------------------------------------------------------------
# Pure-JAX reference (unfused, LoRA not merged) for correctness check
# ----------------------------------------------------------------------------
def esm_self_attn_ref(x, attention_mask, params, n_head):
    B, S, D = x.shape
    E = D // n_head

    def proj(name):
        p = params[name]
        y = x @ p["w"] + p["b"]
        if p["use_lora"]:
            y = y + (x @ p["lora_a"]) @ p["lora_b_scaled"]
        return y

    def split_heads(t):
        return t.reshape(B, S, n_head, E).transpose(0, 2, 1, 3)

    q, k, v = (split_heads(proj("query")), split_heads(proj("key")),
               split_heads(proj("value")))

    inv_freq = 1.0 / (10000.0 ** (jnp.arange(0, E, 2, dtype=jnp.float32) / E))
    t = jnp.arange(S, dtype=jnp.float32)
    freqs = jnp.outer(t, inv_freq)
    emb = jnp.concatenate([freqs, freqs], axis=-1)
    cos, sin = jnp.cos(emb), jnp.sin(emb)

    def rotate_half(u):
        u1, u2 = u[..., : E // 2], u[..., E // 2:]
        return jnp.concatenate([-u2, u1], axis=-1)

    q = q * cos + rotate_half(q) * sin
    k = k * cos + rotate_half(k) * sin

    scale = 1.0 / math.sqrt(E)
    s = jnp.einsum("bhqe,bhke->bhqk", q, k) * scale
    s = s + attention_mask[:, None, None, :]
    causal = jnp.tril(jnp.ones((S, S), bool))
    s = jnp.where(causal[None, None], s, -jnp.inf)
    p = jax.nn.softmax(s, axis=-1)
    y = jnp.einsum("bhqk,bhke->bhqe", p, v)
    return y.transpose(0, 2, 1, 3).reshape(B, S, D)


# ----------------------------------------------------------------------------
def make_params(key, n_embd, lora_r, lora_alpha, lora_flags):
    params = {}
    for i, (name, use_lora) in enumerate(zip(("query", "key", "value"), lora_flags)):
        kw, kb, ka, klb = jax.random.split(jax.random.fold_in(key, i), 4)
        bound = 1.0 / math.sqrt(n_embd)
        w = jax.random.uniform(kw, (n_embd, n_embd), jnp.float32, -bound, bound)
        b = jax.random.uniform(kb, (1, n_embd), jnp.float32, -bound, bound)
        std_dev = 1.0 / math.sqrt(lora_r)
        lora_a = jax.random.normal(ka, (n_embd, lora_r), jnp.float32) * std_dev
        # Torch inits lora_B to zeros (LoRA is a no-op at init); use small random
        # values so the LoRA path is actually exercised numerically.
        lora_b = jax.random.normal(klb, (lora_r, n_embd), jnp.float32) * 0.05
        params[name] = dict(
            w=w, b=b, lora_a=lora_a,
            lora_b_scaled=jnp.float32(lora_alpha) * lora_b,
            use_lora=use_lora,
        )
    return params


def _run_check(B, S, D, H, lora_r, lora_alpha, lora_flags, seed):
    key = jax.random.PRNGKey(seed)
    kx, kp = jax.random.split(key)
    x = jax.random.normal(kx, (B, S, D), jnp.float32)

    # Additive key-padding mask: batch 0 fully valid, batch 1 has last 2 masked.
    valid_len = jnp.array([S, S - 2])
    attention_mask = jnp.where(jnp.arange(S)[None, :] < valid_len[:, None],
                               0.0, -1e9).astype(jnp.float32)

    params = make_params(kp, D, lora_r, lora_alpha, lora_flags)

    y = esm_self_attn_pallas(x, attention_mask, params, H)
    y = jax.block_until_ready(y)

    y_ref = esm_self_attn_ref(x, attention_mask, params, H)
    assert y.shape == (B, S, D)
    err = jnp.max(jnp.abs(y - y_ref))
    assert jnp.allclose(y, y_ref, atol=5e-3, rtol=5e-3), f"max abs err {err}"


if __name__ == "__main__":
    # Small config matching the module defaults: B=2, S=8, n_embd=32, H=4 (E=8).
    # (exercises the un-fused-RoPE fallback and full-dim tile paths)
    _run_check(B=2, S=8, D=32, H=4, lora_r=4, lora_alpha=8,
               lora_flags=(True, False, True), seed=0)
    # Larger config that exercises the fused-RoPE projection epilogue, head
    # grouping (hg*E = 128), lane-dense output store, causal DMA clamp and the
    # multi-column-tile projection grid.
    _run_check(B=2, S=256, D=256, H=4, lora_r=4, lora_alpha=8,
               lora_flags=(True, False, True), seed=1)
    print("KERNEL_OK")
</pallas_src>

<mosaic_0001>
module attributes {stable_mosaic.version = 11 : i64} {
  func.func @_qkv_proj_kernel(%arg0: i32, %arg1: i32, %arg2: i32, %arg3: memref<16x32xf32, #tpu.memory_space<vmem>>, %arg4: memref<32x96xf32, #tpu.memory_space<vmem>>, %arg5: memref<1x96xf32, #tpu.memory_space<vmem>>, %arg6: memref<16x96xf32, #tpu.memory_space<vmem>>, %arg7: memref<16x96xf32, #tpu.memory_space<vmem>>) attributes {dimension_semantics = [#tpu.dimension_semantics<parallel>, #tpu.dimension_semantics<parallel>, #tpu.dimension_semantics<arbitrary>], iteration_bounds = array<i64: 1, 1, 1>, scalar_prefetch = 0 : i64, scratch_operands = 1 : i64, tpu.core_type = #tpu.core_type<tc>, window_params = [{transform_indices = @transform_0, window_bounds = array<i64: 16, 32>}, {transform_indices = @transform_1, window_bounds = array<i64: 32, 96>}, {transform_indices = @transform_2, window_bounds = array<i64: 1, 96>}, {transform_indices = @transform_3, window_bounds = array<i64: 16, 96>}]} {
    %c0_i32 = arith.constant 0 : i32
    %0 = arith.cmpi eq, %arg2, %c0_i32 : i32
    %1 = arith.extui %0 : i1 to i32
    %c0_i32_0 = arith.constant 0 : i32
    %2 = arith.cmpi ne, %1, %c0_i32_0 : i32
    scf.if %2 {
      %cst_10 = arith.constant 0.000000e+00 : f32
      %12 = vector.broadcast %cst_10 : f32 to vector<16x96xf32>
      %c0_11 = arith.constant 0 : index
      %c0_12 = arith.constant 0 : index
      %13 = vector.load %arg7[%c0_11, %c0_12] : memref<16x96xf32, #tpu.memory_space<vmem>>, vector<16x96xf32>
      tpu.vector_store %arg7[%c0_11, %c0_12], %12 {strides = array<i32>} : memref<16x96xf32, #tpu.memory_space<vmem>>, vector<16x96xf32>,
    } else {
    }
    %c0 = arith.constant 0 : index
    %c0_1 = arith.constant 0 : index
    %3 = vector.load %arg7[%c0, %c0_1] : memref<16x96xf32, #tpu.memory_space<vmem>>, vector<16x96xf32>
    %c0_2 = arith.constant 0 : index
    %c0_3 = arith.constant 0 : index
    %4 = vector.load %arg3[%c0_2, %c0_3] : memref<16x32xf32, #tpu.memory_space<vmem>>, vector<16x32xf32>
    %c0_4 = arith.constant 0 : index
    %c0_5 = arith.constant 0 : index
    %5 = vector.load %arg4[%c0_4, %c0_5] : memref<32x96xf32, #tpu.memory_space<vmem>>, vector<32x96xf32>
    %cst = arith.constant dense<0.000000e+00> : vector<16x96xf32>
    %6 = tpu.matmul %4, %5, %cst {dimension_numbers = #tpu.dot_dimension_numbers<[1], [0], [0], [1], [0, 0, 1, 1], [], []>} : vector<16x32xf32>, vector<32x96xf32>, vector<16x96xf32> -> vector<16x96xf32>
    %7 = arith.addf %3, %6 : vector<16x96xf32>
    %c0_6 = arith.constant 0 : index
    %c0_7 = arith.constant 0 : index
    %8 = vector.load %arg7[%c0_6, %c0_7] : memref<16x96xf32, #tpu.memory_space<vmem>>, vector<16x96xf32>
    tpu.vector_store %arg7[%c0_6, %c0_7], %7 {strides = array<i32>} : memref<16x96xf32, #tpu.memory_space<vmem>>, vector<16x96xf32>,
    %c0_i32_8 = arith.constant 0 : i32
    %9 = arith.cmpi eq, %arg2, %c0_i32_8 : i32
    %10 = arith.extui %9 : i1 to i32
    %c0_i32_9 = arith.constant 0 : i32
    %11 = arith.cmpi ne, %10, %c0_i32_9 : i32
    scf.if %11 {
      %c0_10 = arith.constant 0 : index
      %c0_11 = arith.constant 0 : index
      %12 = vector.load %arg7[%c0_10, %c0_11] : memref<16x96xf32, #tpu.memory_space<vmem>>, vector<16x96xf32>
      %c0_12 = arith.constant 0 : index
      %c0_13 = arith.constant 0 : index
      %13 = vector.load %arg5[%c0_12, %c0_13] : memref<1x96xf32, #tpu.memory_space<vmem>>, vector<1x96xf32>
      %14 = vector.broadcast %13 : vector<1x96xf32> to vector<16x96xf32>
      %15 = arith.addf %12, %14 : vector<16x96xf32>
      %c0_14 = arith.constant 0 : index
      %c0_15 = arith.constant 0 : index
      %16 = vector.load %arg6[%c0_14, %c0_15] : memref<16x96xf32, #tpu.memory_space<vmem>>, vector<16x96xf32>
      tpu.vector_store %arg6[%c0_14, %c0_15], %15 {strides = array<i32>} : memref<16x96xf32, #tpu.memory_space<vmem>>, vector<16x96xf32>,
    } else {
    }
    return
  }
  func.func @transform_0(%arg0: i32, %arg1: i32, %arg2: i32) -> (i32, i32) {
    %c0_i32 = arith.constant 0 : i32
    return %arg0, %arg2 : i32, i32
  }
  func.func @transform_1(%arg0: i32, %arg1: i32, %arg2: i32) -> (i32, i32) {
    %c0_i32 = arith.constant 0 : i32
    return %arg2, %arg1 : i32, i32
  }
  func.func @transform_2(%arg0: i32, %arg1: i32, %arg2: i32) -> (i32, i32) {
    %c0_i32 = arith.constant 0 : i32
    %c0_i32_0 = arith.constant 0 : i32
    return %c0_i32, %arg1 : i32, i32
  }
  func.func @transform_3(%arg0: i32, %arg1: i32, %arg2: i32) -> (i32, i32) {
    %c0_i32 = arith.constant 0 : i32
    return %arg0, %arg1 : i32, i32
  }
}

</mosaic_0001>

<llo_original>
// kernel: tpu_custom_call.1
$region0: #{tpu_custom_call.1}
  #allocation0 [shape = 'u32[]', space=smem, size = 0x4, offset = 0x4, fixed_abs, tag = 'smem constant byte address 0x4 - core index']
  #allocation1 [shape = 'u32[144,128]{1,0:T(1,128)}', space=vmem, size = 0x12000, scoped, tag = 'internal scratch']
  #allocation2 [shape = 'f32[16,96]{1,0:T(8,128)}', space=vmem, size = 0x2000, scoped, tag = 'scratch operand']
  %s0 = inlined_call_operand.hbm [shape: f32[16,32], index: 0, kind: input, shape index: {}]
  %s1 = inlined_call_operand.hbm [shape: f32[32,96], index: 1, kind: input, shape index: {}]
  %s2 = inlined_call_operand.hbm [shape: f32[1,96], index: 2, kind: input, shape index: {}]
  %s3 = inlined_call_operand.hbm [shape: f32[16,96], index: 3, kind: output, shape index: {}]
  %s4 = sld [smem:[#allocation0]]
  $region42: #{tpu_custom_call.1} parent=0
    _
  %s6 = ssub.s32 1, %s4
  %s7 = scalar_select 0, %s6, %s4
  $region1: #{tpu_custom_call.1} parent=0
    #allocation3 [shape = 'u8[8192]{0}', space=vmem, size = 0x2000, scoped, tag = 'input window, operand 0, single buffered']
    #allocation4 [shape = 's32[1]{0}', space=sflag, size = 0x4, scoped, tag = 'scoped memory for tpu_custom_call.1']
    #allocation5 [shape = 's32[1]{0}', space=sflag, size = 0x4, scoped, tag = 'scoped memory for tpu_custom_call.1']
    #allocation6 [shape = 'u8[16384]{0}', space=vmem, size = 0x4000, scoped, tag = 'input window, operand 1, single buffered']
    #allocation7 [shape = 's32[1]{0}', space=sflag, size = 0x4, scoped, tag = 'scoped memory for tpu_custom_call.1']
    #allocation8 [shape = 'u8[512]{0}', space=vmem, size = 0x400, scoped, tag = 'input window, operand 2, single buffered']
    #allocation9 [shape = 'u8[8192]{0}', space=vmem, size = 0x2000, scoped, tag = 'output window, operand 0, single buffered']
    %8 = vsyncpa [#allocation4], 0
    %9 = vsyncpa [#allocation7], 0
    %10 = vsyncpa [#allocation5], 0
    // Predicated region
    $region2: #{tpu_custom_call.1} parent=1 // pred_check
      _
    $region3: #{tpu_custom_call.1} parent=1 // pred_check_branch
      %12 = sbr.rel (0) target = $region5
    $region4: #{tpu_custom_call.1} parent=1 // pred_region
      %s14 = ssub.s32 256, 256
      %15 = vsyncadd [#allocation4], %s14
      %s16 = sshll.u32 [#allocation3], 4
      %s17 = int_to_ptr.vmem [resolvable:$true] %s16
      %22 = dma.hbm_to_vmem [thread:$0]  %s0, 256, %s17, [#allocation4], 128, 128, 8
    $region5: #{tpu_custom_call.1} parent=1 // pred_fallthru
      _
    // Predicated region
    $region6: #{tpu_custom_call.1} parent=1 // pred_check
      _
    $region7: #{tpu_custom_call.1} parent=1 // pred_check_branch
      %24 = sbr.rel (0) target = $region9
    $region8: #{tpu_custom_call.1} parent=1 // pred_region
      %s26 = ssub.s32 512, 512
      %27 = vsyncadd [#allocation7], %s26
      %s28 = sshll.u32 [#allocation6], 4
      %s29 = int_to_ptr.vmem [resolvable:$true] %s28
      %34 = dma.hbm_to_vmem [thread:$0]  %s1, 512, %s29, [#allocation7], 128, 128, 8
    $region9: #{tpu_custom_call.1} parent=1 // pred_fallthru
      _
    // Predicated region
    $region10: #{tpu_custom_call.1} parent=1 // pred_check
      _
    $region11: #{tpu_custom_call.1} parent=1 // pred_check_branch
      %36 = sbr.rel (0) target = $region13
    $region12: #{tpu_custom_call.1} parent=1 // pred_region
      %s38 = ssub.s32 16, 16
      %39 = vsyncadd [#allocation7], %s38
      %s41 = sshll.u32 [#allocation8], 4
      %s42 = int_to_ptr.vmem [resolvable:$true] %s41
      %44 = dma.hbm_to_vmem [thread:$0]  %s2, 16, %s42, [#allocation7]
    $region13: #{tpu_custom_call.1} parent=1 // pred_fallthru
      _
    // Predicated region
    $region14: #{tpu_custom_call.1} parent=1 // pred_check
      _
    $region15: #{tpu_custom_call.1} parent=1 // pred_check_branch
      %46 = sbr.rel (0) target = $region17
    $region16: #{tpu_custom_call.1} parent=1 // pred_region
      %47 = dma.done [#allocation4], 256
    $region17: #{tpu_custom_call.1} parent=1 // pred_fallthru
      _
    // Predicated region
    $region18: #{tpu_custom_call.1} parent=1 // pred_check
      _
    $region19: #{tpu_custom_call.1} parent=1 // pred_check_branch
      %49 = sbr.rel (0) target = $region21
    $region20: #{tpu_custom_call.1} parent=1 // pred_region
      %50 = dma.done [#allocation7], 512
    $region21: #{tpu_custom_call.1} parent=1 // pred_fallthru
      _
    // Predicated region
    $region22: #{tpu_custom_call.1} parent=1 // pred_check
      _
    $region23: #{tpu_custom_call.1} parent=1 // pred_check_branch
      %52 = sbr.rel (0) target = $region25
    $region24: #{tpu_custom_call.1} parent=1 // pred_region
      %53 = dma.done [#allocation7], 16
    $region25: #{tpu_custom_call.1} parent=1 // pred_fallthru
      _
    %p54 = scmp.eq.s32.totalorder 0, 0
    // Predicated region
    $region26: #{tpu_custom_call.1} parent=1 // pred_check
      %p55 = pneg %p54
    $region27: #{tpu_custom_call.1} parent=1 // pred_check_branch
      %57 = sbr.rel (%p55) target = $region29
    $region28: #{tpu_custom_call.1} parent=1 // pred_region
      %vm58 = vcmask 785408
      %59 = vst.msk [vmem:[#allocation2] sm:$0xff] %vm58, 0.0
      %60 = vst.msk [vmem:[#allocation2 + $0x8] sm:$0xff] %vm58, 0.0
    $region29: #{tpu_custom_call.1} parent=1 // pred_fallthru
      _
    %v61 = vld [vmem:[#allocation2] sm:$0xff]
    %v62 = vld [vmem:[#allocation2 + $0x8] sm:$0xff]
    %v63 = vld [vmem:[#allocation3] sm:$0xff]
    %v64 = vld [vmem:[#allocation3 + $0x8] sm:$0xff]
    %v65 = vld [vmem:[#allocation6] sm:$0xff]
    %v66 = vld [vmem:[#allocation6 + $0x8] sm:$0xff]
    %v67 = vld [vmem:[#allocation6 + $0x10] sm:$0xff]
    %v68 = vld [vmem:[#allocation6 + $0x18] sm:$0xff]
    %vm69 = vcmask 261120
    %v71 = vsel %vm69, %v63, 0
    %v74 = vsel %vm69, %v64, 0
    %76 = vmatprep.subr.mxu0 0.0
    %77 = vmatpush1.msra.mxu0 %v65
    %78 = vmatprep.subr.mxu0 0.0
    %79 = vmatpush1.msra.mxu0 %v66
    %80 = vmatprep.subr.mxu0 0.0
    %81 = vmatpush1.msra.mxu0 %v67
    %82 = vmatprep.subr.mxu0 0.0
    %83 = vmatpush1.msra.mxu0 %v68
    %84 = vmatprep.subr.mxu0 0.0
    %85 = vmatpush1.msra.mxu0 0.0
    %86 = vmatprep.subr.mxu0 0.0
    %87 = vmatpush1.msra.mxu0 0.0
    %88 = vmatprep.subr.mxu0 0.0
    %89 = vmatpush1.msra.mxu0 0.0
    %90 = vmatprep.subr.mxu0 0.0
    %91 = vmatpush1.msra.mxu0 0.0
    %92 = vmatprep.subr.mxu0 0.0
    %93 = vmatpush1.msra.mxu0 0.0
    %94 = vmatprep.subr.mxu0 0.0
    %95 = vmatpush1.msra.mxu0 0.0
    %96 = vmatprep.subr.mxu0 0.0
    %97 = vmatpush1.msra.mxu0 0.0
    %98 = vmatprep.subr.mxu0 0.0
    %99 = vmatpush1.msra.mxu0 0.0
    %100 = vmatprep.subr.mxu0 0.0
    %101 = vmatpush1.msra.mxu0 0.0
    %102 = vmatprep.subr.mxu0 0.0
    %103 = vmatpush1.msra.mxu0 0.0
    %104 = vmatprep.subr.mxu0 0.0
    %105 = vmatpush1.msra.mxu0 0.0
    %106 = vmatprep.subr.mxu0 0.0
    %107 = vmatpush1.msra.mxu0 0.0
    %108 = vmatprep.subr.mxu0 0.0
    %109 = vmatpush1.msra.mxu0 0.0
    %110 = vmatprep.subr.mxu0 0.0
    %111 = vmatpush1.msra.mxu0 0.0
    %112 = vmatprep.subr.mxu0 0.0
    %113 = vmatpush1.msra.mxu0 0.0
    %114 = vmatprep.subr.mxu0 0.0
    %115 = vmatpush1.msra.mxu0 0.0
    %116 = vmatprep.subr.mxu0 0.0
    %117 = vmatpush1.msra.mxu0 0.0
    %118 = vmatprep.subr.mxu0 0.0
    %119 = vmatpush1.msra.mxu0 0.0
    %120 = vmatprep.subr.mxu0 0.0
    %121 = vmatpush1.msra.mxu0 0.0
    %122 = vmatprep.subr.mxu0 0.0
    %123 = vmatpush1.msra.mxu0 0.0
    %124 = vmatprep.subr.mxu0 0.0
    %125 = vmatpush1.msra.mxu0 0.0
    %126 = vmatprep.subr.mxu0 0.0
    %127 = vmatpush1.msra.mxu0 0.0
    %128 = vmatprep.subr.mxu0 0.0
    %129 = vmatpush1.msra.mxu0 0.0
    %130 = vmatprep.subr.mxu0 0.0
    %131 = vmatpush1.msra.mxu0 0.0
    %132 = vmatprep.subr.mxu0 0.0
    %133 = vmatpush1.msra.mxu0 0.0
    %134 = vmatprep.subr.mxu0 0.0
    %135 = vmatpush1.msra.mxu0 0.0
    %136 = vmatprep.subr.mxu0 0.0
    %137 = vmatpush1.msra.mxu0 0.0
    %138 = vmatprep.subr.mxu0 0.0
    %139 = vmatpush1.msra.mxu0 0.0
    %140 = vmatprep.mubr.f32.mxu0 0.0
    %141 = vmatmul.mubr.f32.gmra.mrb[0].mxu0 %v71
    %v142 = vpop.f32.mrb[0].mxu0
    %v143 = vadd.f32 0.0, %v142
    %v144 = vpop.f32.mrb[0].mxu0
    %145 = vmatprep.mubr.f32.mxu0 0.0
    %146 = vmatmul.mubr.f32.gmra.mrb[0].mxu0 %v74
    %v147 = vpop.f32.mrb[0].mxu0
    %v148 = vadd.f32 0.0, %v147
    %v149 = vpop.f32.mrb[0].mxu0
    %150 = vdwg.mxu0
    %v151 = vadd.f32 %v61, %v143
    %v152 = vadd.f32 %v62, %v148
    %vm153 = vcmask 785408
    %154 = vst.msk [vmem:[#allocation2] sm:$0xff] %vm153, %v151
    %155 = vst.msk [vmem:[#allocation2 + $0x8] sm:$0xff] %vm153, %v152
    // Predicated region
    $region30: #{tpu_custom_call.1} parent=1 // pred_check
      %p156 = pneg %p54
    $region31: #{tpu_custom_call.1} parent=1 // pred_check_branch
      %158 = sbr.rel (%p156) target = $region33
    $region32: #{tpu_custom_call.1} parent=1 // pred_region
      %v159 = vld [vmem:[#allocation2] sm:$0xff]
      %v160 = vld [vmem:[#allocation2 + $0x8] sm:$0xff]
      %v161 = vld [vmem:[#allocation8] sm:$0x1]
      %v163 = vlaneseq
      %v164 = vshrl.u32 %v163, 7
      %v165 = vsub.s32 0, %v164
      %v166 = vrot.slane %v161, %v165
      %v168 = vadd.f32 %v159, %v166
      %v169 = vadd.f32 %v160, %v166
      %170 = vst.msk [vmem:[#allocation9] sm:$0xff] %vm153, %v168
      %171 = vst.msk [vmem:[#allocation9 + $0x8] sm:$0xff] %vm153, %v169
    $region33: #{tpu_custom_call.1} parent=1 // pred_fallthru
      _
    // Predicated region
    $region34: #{tpu_custom_call.1} parent=1 // pred_check
      _
    $region35: #{tpu_custom_call.1} parent=1 // pred_check_branch
      %173 = sbr.rel (0) target = $region37
    $region36: #{tpu_custom_call.1} parent=1 // pred_region
      %s175 = ssub.s32 256, 256
      %176 = vsyncadd [#allocation5], %s175
      %s177 = sshll.u32 [#allocation9], 4
      %s178 = int_to_ptr.vmem [resolvable:$true] %s177
      %183 = dma.vmem_to_hbm [thread:$0]  %s178, 256, %s3, [#allocation5], 128, 128, 8
    $region37: #{tpu_custom_call.1} parent=1 // pred_fallthru
      _
    // Predicated region
    $region38: #{tpu_custom_call.1} parent=1 // pred_check
      _
    $region39: #{tpu_custom_call.1} parent=1 // pred_check_branch
      %185 = sbr.rel (0) target = $region41
    $region40: #{tpu_custom_call.1} parent=1 // pred_region
      %186 = dma.done [#allocation5], 256
    $region41: #{tpu_custom_call.1} parent=1 // pred_fallthru
      _
    %187 = vsyncpa [#allocation4], 1
    %188 = vsyncpa [#allocation7], 1
    %189 = vsyncpa [#allocation5], 1

</llo_original>
